<compile_context>
chip_gen: v7x
topology: tpu7x:2x2x1
jax: 0.10.0
libtpu: 0.0.40
codegen_flags: <defaults>
</compile_context>

<pallas_src>
import functools

import jax
import jax.numpy as jnp
from jax import lax
from jax.experimental import pallas as pl
from jax.experimental.pallas import tpu as pltpu


_CHUNK_ROWS = 256                       # lane-rows per inner chunk (VMEM temp cap)
_VMEM_LIMIT_BYTES = 48 * 1024 * 1024    # < v7x 64 MiB physical; > v5e 16 MiB default


def _focal_factor(one_minus_pt, gamma):
    """(1 - p_t) ** gamma, specialized to VPU multiplies for small integer gamma."""
    if float(gamma) == int(gamma) and 0 <= int(gamma) <= 8:
        gi = int(gamma)
        if gi == 0:
            return jnp.ones_like(one_minus_pt)
        f = one_minus_pt
        for _ in range(gi - 1):
            f = f * one_minus_pt
        return f
    # TODO(synk): non-integer gamma with soft targets outside [0,1] can yield NaN
    # via exp(gamma*log(.)); this matches the PyTorch/JAX reference behaviour.
    return one_minus_pt ** gamma


def _focal_loss_kernel(x_ref, t_ref, out_ref, *, gamma, alpha, use_alpha,
                       tr, chunk, n_chunks, n_rows_total, approx_recip):
    """One (tr, L) lane-dense block -> (1, 1, L) partial per-lane column sums."""
    i = pl.program_id(0)
    L = x_ref.shape[-1]
    ragged = (n_rows_total % tr) != 0      # static: only the last block can be short

    def chunk_colsum(c):
        if n_chunks == 1:
            x = x_ref[...].astype(jnp.float32)
            t = t_ref[...].astype(jnp.float32)
        else:
            r0 = pl.multiple_of(c * chunk, chunk)
            x = x_ref[pl.ds(r0, chunk), :].astype(jnp.float32)
            t = t_ref[pl.ds(r0, chunk), :].astype(jnp.float32)

        # One exp per element, reused for the stable BCE term and the sigmoid.
        e = jnp.exp(-jnp.abs(x))
        ce = jnp.maximum(x, 0.0) - x * t + jnp.log1p(e)
        if approx_recip:
            inv = pl.reciprocal(1.0 + e, approx=True)    # EUP vrcp, ~1e-4 rel err
        else:
            inv = 1.0 / (1.0 + e)
        p = jnp.where(x >= 0.0, inv, e * inv)            # numerically stable sigmoid

        one_minus_pt = p + t - 2.0 * (p * t)             # == 1 - (p*t + (1-p)*(1-t))
        loss = ce * _focal_factor(one_minus_pt, gamma)
        if use_alpha:
            # alpha*t + (1-alpha)*(1-t) == (1-alpha) + (2*alpha-1)*t
            loss = ((1.0 - alpha) + (2.0 * alpha - 1.0) * t) * loss

        if ragged:
            # Rows past the logical array in the last (partial) block hold
            # unspecified data; zero them before summing.
            row = lax.broadcasted_iota(jnp.int32, loss.shape, 0)
            valid = n_rows_total - i * tr - c * chunk
            loss = jnp.where(row < valid, loss, 0.0)

        return jnp.sum(loss, axis=0, keepdims=True)      # (1, L)

    if n_chunks == 1:
        acc = chunk_colsum(0)
    else:
        # Real loop (not unrolled) bounds live VMEM temporaries to one chunk;
        # its small per-iteration overhead hides under the HBM-bound block DMA.
        acc = lax.fori_loop(0, n_chunks,
                            lambda c, a: a + chunk_colsum(c),
                            jnp.zeros((1, L), jnp.float32))

    out_ref[...] = acc.reshape(out_ref.shape)


def _elementwise_focal_loss(x, t, *, gamma, alpha, use_alpha):
    """Plain-JAX per-element focal loss (used only for the <128-sample tail)."""
    x = x.astype(jnp.float32)
    t = t.astype(jnp.float32)
    p = jax.nn.sigmoid(x)
    ce = jnp.maximum(x, 0.0) - x * t + jnp.log1p(jnp.exp(-jnp.abs(x)))
    loss = ce * _focal_factor(p + t - 2.0 * (p * t), gamma)
    if use_alpha:
        loss = ((1.0 - alpha) + (2.0 * alpha - 1.0) * t) * loss
    return loss


def multilabel_focal_loss(inputs, targets, *, gamma=2.0, alpha=None,
                          reduction='mean', pos_weight=None, class_weights=None,
                          target_block_bytes=4 * 1024 * 1024,
                          approx_recip=True):
    """Pallas TPU implementation of MultilabelFocalLoss.forward ('mean'/'sum')."""
    if reduction not in ('mean', 'sum'):
        reduction = 'mean'

    N, C = inputs.shape
    L = 128 * C                                   # lane-dense row width (multiple of 128)

    # Mirrors PyTorch's `if self.alpha and self.alpha >= 0:` (alpha=0 is skipped).
    use_alpha = bool(alpha) and float(alpha) >= 0
    # Mirrors the PyTorch quirk: gated on pos_weight, multiplies by class_weights.
    use_weights = pos_weight is not None
    if use_weights and class_weights is None:
        raise ValueError("class_weights must be provided when pos_weight is set")
    w = (jnp.asarray(class_weights, dtype=jnp.float32).reshape(C)
         if use_weights else None)

    gamma_f = float(gamma)
    alpha_f = float(alpha) if alpha is not None else 0.0

    # Kernel handles whole 128-sample lane-rows; tiny (<128-sample) tail in JAX.
    N_main = (N // 128) * 128
    rem = N - N_main

    total = jnp.float32(0.0)

    if N_main > 0:
        R = N_main // 128                         # lane-dense rows (128 samples each)

        # Sublane-packing granularity of the second-minor block dim, per dtype.
        sub = {4: 8, 2: 16, 1: 32}
        ix = jnp.dtype(inputs.dtype).itemsize
        it = jnp.dtype(targets.dtype).itemsize
        min_tr = max(sub.get(ix, 8), sub.get(it, 8))

        # target_block_bytes is a per-input-stream budget; size off the combined
        # x+t bytes so mixed dtypes don't silently overshoot VMEM.
        bytes_per_row = L * (ix + it)
        max_tr = max(min_tr, (2 * target_block_bytes) // bytes_per_row)

        if R <= min_tr:
            tr = R                                # single full-extent block
        else:
            tr = min(max_tr, -(-R // 2))          # prefer >=2 grid steps (v7x 2 TCs)
            if tr >= _CHUNK_ROWS:
                tr = (tr // _CHUNK_ROWS) * _CHUNK_ROWS
            else:
                tr = max(min_tr, (tr // min_tr) * min_tr)
        G = -(-R // tr)

        if tr >= _CHUNK_ROWS:
            chunk, n_chunks = _CHUNK_ROWS, tr // _CHUNK_ROWS
        else:
            chunk, n_chunks = tr, 1

        # Zero-copy lane-dense views (contiguous row-major reshape; no padding).
        x = inputs[:N_main].reshape(R, L)
        t = targets[:N_main].reshape(R, L)

        kernel = functools.partial(
            _focal_loss_kernel,
            gamma=gamma_f, alpha=alpha_f, use_alpha=use_alpha,
            tr=tr, chunk=chunk, n_chunks=n_chunks, n_rows_total=R,
            approx_recip=approx_recip)

        elems = N_main * C
        cost = pl.CostEstimate(
            flops=20 * elems,
            transcendentals=3 * elems,
            bytes_accessed=elems * (ix + it) + G * L * 4)

        partial_sums = pl.pallas_call(
            kernel,
            out_shape=jax.ShapeDtypeStruct((G, 1, L), jnp.float32),
            grid_spec=pltpu.PrefetchScalarGridSpec(
                num_scalar_prefetch=0,
                grid=(G,),
                in_specs=[
                    pl.BlockSpec((tr, L), lambda i: (i, 0)),   # logits block
                    pl.BlockSpec((tr, L), lambda i: (i, 0)),   # targets block
                ],
                out_specs=pl.BlockSpec((1, 1, L), lambda i: (i, 0, 0)),
            ),
            compiler_params=pltpu.CompilerParams(
                dimension_semantics=("parallel",),     # independent partial sums
                vmem_limit_bytes=_VMEM_LIMIT_BYTES,
            ),
            cost_estimate=cost,
        )(x, t)

        col_sums = jnp.sum(partial_sums, axis=(0, 1))          # (L,) per-lane sums
        if use_weights:
            total = total + jnp.dot(col_sums, jnp.tile(w, 128))  # lane l -> class l % C
        else:
            total = total + jnp.sum(col_sums)

    if rem > 0:
        # <128 leftover samples: cheaper to finish exactly in plain JAX than to
        # pad and re-materialize the whole slab.
        loss_tail = _elementwise_focal_loss(
            inputs[N_main:], targets[N_main:],
            gamma=gamma_f, alpha=alpha_f, use_alpha=use_alpha)
        if use_weights:
            loss_tail = loss_tail * w[None, :]
        total = total + jnp.sum(loss_tail)

    if reduction == 'mean':
        total = total / (N * C)
    return total


def _reference_focal_loss(inputs, targets, *, gamma, alpha, reduction,
                          pos_weight, class_weights):
    """Pure-JAX reference mirroring the PyTorch forward exactly."""
    x = inputs.astype(jnp.float32)
    t = targets.astype(jnp.float32)
    p = jax.nn.sigmoid(x)
    ce = jnp.maximum(x, 0.0) - x * t + jnp.log1p(jnp.exp(-jnp.abs(x)))
    p_t = p * t + (1.0 - p) * (1.0 - t)
    loss = ce * (1.0 - p_t) ** gamma
    if alpha and alpha >= 0:
        loss = (alpha * t + (1.0 - alpha) * (1.0 - t)) * loss
    if pos_weight is not None:
        loss = loss * jnp.asarray(class_weights, dtype=jnp.float32).reshape(1, -1)
    if reduction == 'mean':
        return loss.mean()
    return loss.sum()


if __name__ == "__main__":
    key = jax.random.PRNGKey(0)
    C = 5                                   # module default num_classes=5
    class_weights = jnp.linspace(0.5, 1.5, C, dtype=jnp.float32)
    pos_weight = jnp.ones((C,), dtype=jnp.float32)   # acts as "is not None" flag

    # Config 1: kernel path (R=2 lane-rows) + 7-sample JAX tail; mean reduction,
    # alpha + class weights, f32 inputs.
    k1, k2, key = jax.random.split(key, 3)
    N1 = 263
    logits1 = jax.random.normal(k1, (N1, C), dtype=jnp.float32)
    targets1 = (jax.random.uniform(k2, (N1, C)) > 0.5).astype(jnp.float32)
    loss1 = multilabel_focal_loss(logits1, targets1, gamma=2.0, alpha=0.25,
                                  reduction='mean', pos_weight=pos_weight,
                                  class_weights=class_weights)
    loss1 = jax.block_until_ready(loss1)
    ref1 = _reference_focal_loss(logits1, targets1, gamma=2.0, alpha=0.25,
                                 reduction='mean', pos_weight=pos_weight,
                                 class_weights=class_weights)
    assert jnp.allclose(loss1, ref1, rtol=1e-3, atol=1e-6), (loss1, ref1)

    # Config 2: bf16 logits + bf16 hard-label targets (half the HBM traffic),
    # sum reduction, no alpha / no weights, no batch tail.
    k3, k4, key = jax.random.split(key, 3)
    N2 = 256
    logits2 = jax.random.normal(k3, (N2, C), dtype=jnp.float32).astype(jnp.bfloat16)
    targets2 = (jax.random.uniform(k4, (N2, C)) > 0.5).astype(jnp.bfloat16)
    loss2 = multilabel_focal_loss(logits2, targets2, gamma=2.0, alpha=None,
                                  reduction='sum')
    loss2 = jax.block_until_ready(loss2)
    ref2 = _reference_focal_loss(logits2, targets2, gamma=2.0, alpha=None,
                                 reduction='sum', pos_weight=None,
                                 class_weights=None)
    assert jnp.allclose(loss2, ref2, rtol=1e-3, atol=1e-5), (loss2, ref2)

    # Config 3: ragged last grid block (R=10, tr=8 -> G=2, last block has 2 valid
    # rows masked in-kernel) plus a 64-sample JAX tail; mean reduction.
    k5, k6, key = jax.random.split(key, 3)
    N3 = 10 * 128 + 64
    logits3 = jax.random.normal(k5, (N3, C), dtype=jnp.float32)
    targets3 = (jax.random.uniform(k6, (N3, C)) > 0.5).astype(jnp.float32)
    loss3 = multilabel_focal_loss(logits3, targets3, gamma=2.0, alpha=None,
                                  reduction='mean')
    loss3 = jax.block_until_ready(loss3)
    ref3 = _reference_focal_loss(logits3, targets3, gamma=2.0, alpha=None,
                                 reduction='mean', pos_weight=None,
                                 class_weights=None)
    assert jnp.allclose(loss3, ref3, rtol=1e-3, atol=1e-6), (loss3, ref3)

    print("KERNEL_OK")
</pallas_src>

<mosaic_0001>
module attributes {stable_mosaic.version = 11 : i64} {
  func.func @_focal_loss_kernel(%arg0: i32, %arg1: memref<2x640xf32, #tpu.memory_space<vmem>>, %arg2: memref<2x640xf32, #tpu.memory_space<vmem>>, %arg3: memref<1x1x640xf32, #tpu.memory_space<vmem>>) attributes {dimension_semantics = [#tpu.dimension_semantics<parallel>], iteration_bounds = array<i64: 1>, scalar_prefetch = 0 : i64, scratch_operands = 0 : i64, tpu.core_type = #tpu.core_type<tc>, window_params = [{transform_indices = @transform_0, window_bounds = array<i64: 2, 640>}, {transform_indices = @transform_1, window_bounds = array<i64: 2, 640>}, {transform_indices = @transform_2, window_bounds = array<i64: 1, 1, 640>}]} {
    %c0 = arith.constant 0 : index
    %c0_0 = arith.constant 0 : index
    %0 = vector.load %arg1[%c0, %c0_0] : memref<2x640xf32, #tpu.memory_space<vmem>>, vector<2x640xf32>
    %c0_1 = arith.constant 0 : index
    %c0_2 = arith.constant 0 : index
    %1 = vector.load %arg2[%c0_1, %c0_2] : memref<2x640xf32, #tpu.memory_space<vmem>>, vector<2x640xf32>
    %2 = math.absf %0 : vector<2x640xf32>
    %cst = arith.constant 0.000000e+00 : f32
    %3 = vector.broadcast %cst : f32 to vector<2x640xf32>
    %4 = arith.subf %3, %2 : vector<2x640xf32>
    %5 = math.exp %4 : vector<2x640xf32>
    %cst_3 = arith.constant 0.000000e+00 : f32
    %6 = vector.broadcast %cst_3 : f32 to vector<2x640xf32>
    %7 = arith.maximumf %0, %6 : vector<2x640xf32>
    %8 = arith.mulf %0, %1 : vector<2x640xf32>
    %9 = arith.subf %7, %8 : vector<2x640xf32>
    %10 = math.log1p %5 : vector<2x640xf32>
    %11 = arith.addf %9, %10 : vector<2x640xf32>
    %cst_4 = arith.constant 1.000000e+00 : f32
    %12 = vector.broadcast %cst_4 : f32 to vector<2x640xf32>
    %13 = arith.addf %12, %5 : vector<2x640xf32>
    %14 = tpu.reciprocal %13 {approx = true} : vector<2x640xf32> -> vector<2x640xf32>
    %cst_5 = arith.constant 0.000000e+00 : f32
    %15 = vector.broadcast %cst_5 : f32 to vector<2x640xf32>
    %16 = arith.cmpf oge, %0, %15 : vector<2x640xf32>
    %17 = arith.mulf %5, %14 : vector<2x640xf32>
    %18 = arith.select %16, %14, %17 : vector<2x640xi1>, vector<2x640xf32>
    %19 = arith.addf %18, %1 : vector<2x640xf32>
    %20 = arith.mulf %18, %1 : vector<2x640xf32>
    %cst_6 = arith.constant 2.000000e+00 : f32
    %21 = vector.broadcast %cst_6 : f32 to vector<2x640xf32>
    %22 = arith.mulf %21, %20 : vector<2x640xf32>
    %23 = arith.subf %19, %22 : vector<2x640xf32>
    %24 = arith.mulf %23, %23 : vector<2x640xf32>
    %25 = arith.mulf %11, %24 : vector<2x640xf32>
    %cst_7 = arith.constant -5.000000e-01 : f32
    %26 = vector.broadcast %cst_7 : f32 to vector<2x640xf32>
    %27 = arith.mulf %26, %1 : vector<2x640xf32>
    %cst_8 = arith.constant 7.500000e-01 : f32
    %28 = vector.broadcast %cst_8 : f32 to vector<2x640xf32>
    %29 = arith.addf %28, %27 : vector<2x640xf32>
    %30 = arith.mulf %29, %25 : vector<2x640xf32>
    %cst_9 = arith.constant dense<0.000000e+00> : vector<640xf32>
    %31 = vector.multi_reduction <add>, %30, %cst_9 [0] : vector<2x640xf32> to vector<640xf32>
    %32 = vector.shape_cast %31 : vector<640xf32> to vector<1x640xf32>
    %33 = vector.shape_cast %32 : vector<1x640xf32> to vector<1x1x640xf32>
    %c0_10 = arith.constant 0 : index
    %c0_11 = arith.constant 0 : index
    %c0_12 = arith.constant 0 : index
    %34 = vector.load %arg3[%c0_10, %c0_11, %c0_12] : memref<1x1x640xf32, #tpu.memory_space<vmem>>, vector<1x1x640xf32>
    tpu.vector_store %arg3[%c0_10, %c0_11, %c0_12], %33 {strides = array<i32>} : memref<1x1x640xf32, #tpu.memory_space<vmem>>, vector<1x1x640xf32>,
    return
  }
  func.func @transform_0(%arg0: i32) -> (i32, i32) {
    %c0_i32 = arith.constant 0 : i32
    %c0_i32_0 = arith.constant 0 : i32
    return %arg0, %c0_i32 : i32, i32
  }
  func.func @transform_1(%arg0: i32) -> (i32, i32) {
    %c0_i32 = arith.constant 0 : i32
    %c0_i32_0 = arith.constant 0 : i32
    return %arg0, %c0_i32 : i32, i32
  }
  func.func @transform_2(%arg0: i32) -> (i32, i32, i32) {
    %c0_i32 = arith.constant 0 : i32
    %c0_i32_0 = arith.constant 0 : i32
    %c0_i32_1 = arith.constant 0 : i32
    return %arg0, %c0_i32, %c0_i32_0 : i32, i32, i32
  }
}

</mosaic_0001>

<llo_original>
// kernel: tpu_custom_call.1
$region0: #{tpu_custom_call.1}
  #allocation0 [shape = 'u32[]', space=smem, size = 0x4, offset = 0x4, fixed_abs, tag = 'smem constant byte address 0x4 - core index']
  #allocation1 [shape = 'u32[144,128]{1,0:T(1,128)}', space=vmem, size = 0x12000, scoped, tag = 'internal scratch']
  %s0 = inlined_call_operand.hbm [shape: f32[2,640], index: 0, kind: input, shape index: {}]
  %s1 = inlined_call_operand.hbm [shape: f32[2,640], index: 1, kind: input, shape index: {}]
  %s2 = inlined_call_operand.hbm [shape: f32[1,1,640], index: 2, kind: output, shape index: {}]
  %s3 = sld [smem:[#allocation0]]
  $region26: #{tpu_custom_call.1} parent=0
    _
  %s5 = ssub.s32 1, %s3
  %s6 = scalar_select 0, %s5, %s3
  $region1: #{tpu_custom_call.1} parent=0
    #allocation2 [shape = 'u8[5120]{0}', space=vmem, size = 0x1400, scoped, tag = 'input window, operand 0, single buffered']
    #allocation3 [shape = 's32[1]{0}', space=sflag, size = 0x4, scoped, tag = 'scoped memory for tpu_custom_call.1']
    #allocation4 [shape = 's32[1]{0}', space=sflag, size = 0x4, scoped, tag = 'scoped memory for tpu_custom_call.1']
    #allocation5 [shape = 'u8[5120]{0}', space=vmem, size = 0x1400, scoped, tag = 'input window, operand 1, single buffered']
    #allocation6 [shape = 's32[1]{0}', space=sflag, size = 0x4, scoped, tag = 'scoped memory for tpu_custom_call.1']
    #allocation7 [shape = 'u8[2560]{0}', space=vmem, size = 0xc00, scoped, tag = 'output window, operand 0, single buffered']
    %7 = vsyncpa [#allocation3], 0
    %8 = vsyncpa [#allocation6], 0
    %9 = vsyncpa [#allocation4], 0
    // Predicated region
    $region2: #{tpu_custom_call.1} parent=1 // pred_check
      _
    $region3: #{tpu_custom_call.1} parent=1 // pred_check_branch
      %11 = sbr.rel (0) target = $region5
    $region4: #{tpu_custom_call.1} parent=1 // pred_region
      %s13 = ssub.s32 160, 160
      %14 = vsyncadd [#allocation3], %s13
      %s16 = sshll.u32 [#allocation2], 4
      %s17 = int_to_ptr.vmem [resolvable:$true] %s16
      %19 = dma.hbm_to_vmem [thread:$0]  %s0, 160, %s17, [#allocation3]
    $region5: #{tpu_custom_call.1} parent=1 // pred_fallthru
      _
    // Predicated region
    $region6: #{tpu_custom_call.1} parent=1 // pred_check
      _
    $region7: #{tpu_custom_call.1} parent=1 // pred_check_branch
      %21 = sbr.rel (0) target = $region9
    $region8: #{tpu_custom_call.1} parent=1 // pred_region
      %s23 = ssub.s32 160, 160
      %24 = vsyncadd [#allocation6], %s23
      %s26 = sshll.u32 [#allocation5], 4
      %s27 = int_to_ptr.vmem [resolvable:$true] %s26
      %29 = dma.hbm_to_vmem [thread:$0]  %s1, 160, %s27, [#allocation6]
    $region9: #{tpu_custom_call.1} parent=1 // pred_fallthru
      _
    // Predicated region
    $region10: #{tpu_custom_call.1} parent=1 // pred_check
      _
    $region11: #{tpu_custom_call.1} parent=1 // pred_check_branch
      %31 = sbr.rel (0) target = $region13
    $region12: #{tpu_custom_call.1} parent=1 // pred_region
      %32 = dma.done [#allocation3], 160
    $region13: #{tpu_custom_call.1} parent=1 // pred_fallthru
      _
    // Predicated region
    $region14: #{tpu_custom_call.1} parent=1 // pred_check
      _
    $region15: #{tpu_custom_call.1} parent=1 // pred_check_branch
      %34 = sbr.rel (0) target = $region17
    $region16: #{tpu_custom_call.1} parent=1 // pred_region
      %35 = dma.done [#allocation6], 160
    $region17: #{tpu_custom_call.1} parent=1 // pred_fallthru
      _
    %v36 = vld [vmem:[#allocation2] sm:$0xff]
    %v37 = vld [vmem:[#allocation2 + $0x8] sm:$0x3]
    %v38 = vld [vmem:[#allocation5] sm:$0xff]
    %v39 = vld [vmem:[#allocation5 + $0x8] sm:$0x3]
    %v40 = vand.u32 2147483647, %v36
    %v41 = vand.u32 2147483647, %v37
    %v42 = vsub.f32 0.0, %v40
    %v43 = vsub.f32 0.0, %v41
    %v44 = vmul.f32 %v42, 1.442695
    %v45 = vpow.pop %v44
    %v46 = vmul.f32 %v43, 1.442695
    %v47 = vpow.pop %v46
    %v48 = vmax.f32 %v36, 0.0
    %v49 = vmax.f32 %v37, 0.0
    %v50 = vmul.f32 %v36, %v38
    %v51 = vmul.f32 %v37, %v39
    %v52 = vsub.f32 %v48, %v50
    %v53 = vsub.f32 %v49, %v51
    %v54 = vadd.f32 %v45, 1.0
    %v55 = vlog2.pop %v54
    %v56 = vmul.f32 %v55, 0.6931472
    %v57 = vmul.f32 -0.5, %v45
    %v58 = vadd.f32 %v57, 1.0
    %v59 = vmul.f32 %v58, %v45
    %v60 = vand.u32 2147483647, %v45
    %vm61 = vcmp.lt.f32.partialorder %v60, 0.0004427343
    %v62 = vsel %vm61, %v59, %v56
    %v63 = vadd.f32 %v47, 1.0
    %v64 = vlog2.pop %v63
    %v65 = vmul.f32 %v64, 0.6931472
    %v66 = vmul.f32 -0.5, %v47
    %v67 = vadd.f32 %v66, 1.0
    %v68 = vmul.f32 %v67, %v47
    %v69 = vand.u32 2147483647, %v47
    %vm70 = vcmp.lt.f32.partialorder %v69, 0.0004427343
    %v71 = vsel %vm70, %v68, %v65
    %v72 = vadd.f32 %v52, %v62
    %v73 = vadd.f32 %v53, %v71
    %v74 = vadd.f32 %v45, 1.0
    %v75 = vadd.f32 %v47, 1.0
    %v76 = vrcp.pop %v74
    %v77 = vrcp.pop %v75
    %vm78 = vcmp.ge.f32.partialorder %v36, 0.0
    %vm79 = vcmp.ge.f32.partialorder %v37, 0.0
    %v80 = vmul.f32 %v45, %v76
    %v81 = vmul.f32 %v47, %v77
    %v82 = vsel %vm78, %v76, %v80
    %v83 = vsel %vm79, %v77, %v81
    %v84 = vadd.f32 %v82, %v38
    %v85 = vadd.f32 %v83, %v39
    %v86 = vmul.f32 %v82, %v38
    %v87 = vmul.f32 %v83, %v39
    %v88 = vmul.f32 %v86, 2.0
    %v89 = vmul.f32 %v87, 2.0
    %v90 = vsub.f32 %v84, %v88
    %v91 = vsub.f32 %v85, %v89
    %v92 = vmul.f32 %v90, %v90
    %v93 = vmul.f32 %v91, %v91
    %v94 = vmul.f32 %v72, %v92
    %v95 = vmul.f32 %v73, %v93
    %v96 = vmul.f32 %v38, -0.5
    %v97 = vmul.f32 %v39, -0.5
    %v98 = vadd.f32 %v96, 0.75
    %v99 = vadd.f32 %v97, 0.75
    %v100 = vmul.f32 %v98, %v94
    %v101 = vmul.f32 %v99, %v95
    %v104 = vcombine.high %v100, %v100
    %v106 = vunpack.c.l.s4 1983009808
    %v107 = vunpack.c.0.s8 %v106
    %v108 = vlaneseq
    %v109 = vshrl.u32 %v108, 7
    %v110 = vsub.s32 %v107, %v109
    %v111 = vrot.slane %v100, %v110
    %v113 = vunpack.c.l.s4 1983009808
    %v114 = vunpack.c.0.s8 %v113
    %v115 = vlaneseq
    %v116 = vshrl.u32 %v115, 7
    %v117 = vsub.s32 %v114, %v116
    %v118 = vrot.slane %v104, %v117
    %v119 = vcombine.high %v111, %v111
    %v120 = vcombine.high %v118, %v118
    %v122 = vunpack.c.l.s4 1983009808
    %v123 = vunpack.c.0.s8 %v122
    %v124 = vlaneseq
    %v125 = vshrl.u32 %v124, 7
    %v126 = vsub.s32 %v123, %v125
    %v127 = vrot.slane %v101, %v126
    %vm133 = vcmask 1041408
    %v134 = vsel %vm133, %v111, 0.0
    %v135 = vrot.slane %v134, 4
    %v136 = vadd.f32 %v134, %v135
    %v137 = vrot.slane %v136, 2
    %v138 = vadd.f32 %v136, %v137
    %v139 = vrot.slane %v138, 1
    %v140 = vadd.f32 %v138, %v139
    %v141 = vsel %vm133, %v119, 0.0
    %v142 = vrot.slane %v141, 4
    %v143 = vadd.f32 %v141, %v142
    %v144 = vrot.slane %v143, 2
    %v145 = vadd.f32 %v143, %v144
    %v146 = vrot.slane %v145, 1
    %v147 = vadd.f32 %v145, %v146
    %v148 = vsel %vm133, %v118, 0.0
    %v149 = vrot.slane %v148, 4
    %v150 = vadd.f32 %v148, %v149
    %v151 = vrot.slane %v150, 2
    %v152 = vadd.f32 %v150, %v151
    %v153 = vrot.slane %v152, 1
    %v154 = vadd.f32 %v152, %v153
    %v155 = vsel %vm133, %v120, 0.0
    %v156 = vrot.slane %v155, 4
    %v157 = vadd.f32 %v155, %v156
    %v158 = vrot.slane %v157, 2
    %v159 = vadd.f32 %v157, %v158
    %v160 = vrot.slane %v159, 1
    %v161 = vadd.f32 %v159, %v160
    %v162 = vsel %vm133, %v127, 0.0
    %v163 = vrot.slane %v162, 4
    %v164 = vadd.f32 %v162, %v163
    %v165 = vrot.slane %v164, 2
    %v166 = vadd.f32 %v164, %v165
    %v167 = vrot.slane %v166, 1
    %v168 = vadd.f32 %v166, %v167
    %v174 = vcombine.low %v140, %v147
    %v175 = vcombine.low %v154, %v161
    %v177 = vunpack.c.l.s4 1966171168
    %v178 = vunpack.c.0.s8 %v177
    %v179 = vlaneseq
    %v180 = vshrl.u32 %v179, 7
    %v181 = vsub.s32 %v178, %v180
    %v182 = vrot.slane %v174, %v181
    %v184 = vunpack.c.l.s4 1966171168
    %v185 = vunpack.c.0.s8 %v184
    %v186 = vlaneseq
    %v187 = vshrl.u32 %v186, 7
    %v188 = vsub.s32 %v185, %v187
    %v189 = vrot.slane %v175, %v188
    %v191 = vunpack.c.l.s4 1966171168
    %v192 = vunpack.c.0.s8 %v191
    %v193 = vlaneseq
    %v194 = vshrl.u32 %v193, 7
    %v195 = vsub.s32 %v192, %v194
    %v196 = vrot.slane %v168, %v195
    %v197 = vcombine.low %v182, %v189
    %v199 = vunpack.c.l.s4 1966171168
    %v200 = vunpack.c.0.s8 %v199
    %v201 = vlaneseq
    %v202 = vshrl.u32 %v201, 7
    %v203 = vsub.s32 %v200, %v202
    %v204 = vrot.slane %v197, %v203
    %v206 = vunpack.c.l.s4 1966171168
    %v207 = vunpack.c.0.s8 %v206
    %v208 = vlaneseq
    %v209 = vshrl.u32 %v208, 7
    %v210 = vsub.s32 %v207, %v209
    %v211 = vrot.slane %v196, %v210
    %v212 = vcombine.low %v204, %v211
    %v214 = vlaneseq
    %vm215 = vcmp.ge.s32.totalorder %v214, 0
    %vm216 = vcmp.lt.s32.totalorder %v214, 640
    %vm217 = vmand %vm215, %vm216
    %218 = vst.msk [vmem:[#allocation7] sm:$0x1f] %vm217, %v212
    // Predicated region
    $region18: #{tpu_custom_call.1} parent=1 // pred_check
      _
    $region19: #{tpu_custom_call.1} parent=1 // pred_check_branch
      %220 = sbr.rel (0) target = $region21
    $region20: #{tpu_custom_call.1} parent=1 // pred_region
      %s222 = ssub.s32 80, 80
      %223 = vsyncadd [#allocation4], %s222
      %s225 = sshll.u32 [#allocation7], 4
      %s226 = int_to_ptr.vmem [resolvable:$true] %s225
      %228 = dma.vmem_to_hbm [thread:$0]  %s226, 80, %s2, [#allocation4]
    $region21: #{tpu_custom_call.1} parent=1 // pred_fallthru
      _
    // Predicated region
    $region22: #{tpu_custom_call.1} parent=1 // pred_check
      _
    $region23: #{tpu_custom_call.1} parent=1 // pred_check_branch
      %230 = sbr.rel (0) target = $region25
    $region24: #{tpu_custom_call.1} parent=1 // pred_region
      %231 = dma.done [#allocation4], 80
    $region25: #{tpu_custom_call.1} parent=1 // pred_fallthru
      _
    %232 = vsyncpa [#allocation3], 1
    %233 = vsyncpa [#allocation6], 1
    %234 = vsyncpa [#allocation4], 1

</llo_original>
